<compile_context>
chip_gen: v7x
topology: tpu7x:2x2x1
jax: 0.10.0
libtpu: 0.0.40
codegen_flags: <defaults>
</compile_context>

<pallas_src>
import math
import functools

import jax
import jax.numpy as jnp
from jax.experimental import pallas as pl
from jax.experimental.pallas import tpu as pltpu


def _round_up(n, m):
    return ((n + m - 1) // m) * m


def _mhsa_kernel(x_ref, wqkv_ref, wo_ref, gamma_ref, beta_ref,
                 out_ref, attn_ref, xn_ref, acc_ref, *, DKP, DVP, eps):
    h = pl.program_id(1)
    n_heads = pl.num_programs(1)

    # ---- once per batch element: LayerNorm -> bf16 scratch, residual -> f32 accumulator ----
    @pl.when(h == 0)
    def _():
        x = x_ref[0]                                           # (T, D) f32 residual source
        diff = x - jnp.mean(x, axis=-1, keepdims=True)
        var = jnp.mean(diff * diff, axis=-1, keepdims=True)
        xn = diff * jax.lax.rsqrt(var + eps)
        xn = xn * gamma_ref[0] + beta_ref[0]
        xn_ref[...] = xn.astype(xn_ref.dtype)                  # bf16 for the MXU
        acc_ref[...] = x                                       # init accumulator with residual

    xn = xn_ref[...]                                           # (T, D) bf16

    # ---- fused per-head QKV projection: one MXU pass, lane-aligned padded layout ----
    # wqkv_ref stays fully VMEM-resident; dynamic first-axis index selects this head.
    qkv = jnp.dot(xn, wqkv_ref[h], preferred_element_type=jnp.float32)   # (T, 2*DKP+DVP) f32
    q = qkv[:, :DKP].astype(jnp.bfloat16)                      # (T, DKP), scale pre-folded
    k = qkv[:, DKP:2 * DKP].astype(jnp.bfloat16)               # (T, DKP)
    v = qkv[:, 2 * DKP:].astype(jnp.bfloat16)                  # (T, DVP)

    # ---- scaled dot-product attention for this head (no explicit k transpose) ----
    scores = jax.lax.dot_general(
        q, k, dimension_numbers=(((1,), (1,)), ((), ())),
        preferred_element_type=jnp.float32)                    # (T, T) f32
    scores = scores - jnp.max(scores, axis=-1, keepdims=True)
    p = jnp.exp(scores)
    inv_l = pl.reciprocal(jnp.sum(p, axis=-1, keepdims=True), approx=True)
    attn = p * inv_l                                           # (T, T) f32
    attn_bf = attn.astype(jnp.bfloat16)
    attn_ref[0, 0] = attn_bf.astype(attn_ref.dtype)            # bf16 per-head (1,1,T,T) block

    ctx = jnp.dot(attn_bf, v, preferred_element_type=jnp.float32)        # (T, DVP) f32

    # ---- per-head slice of the output projection (K = DVP >= 128), accumulated ----
    acc_ref[...] += jnp.dot(ctx.astype(jnp.bfloat16), wo_ref[h],
                            preferred_element_type=jnp.float32)          # (T, D)

    @pl.when(h == n_heads - 1)
    def _():
        out_ref[0] = acc_ref[...].astype(out_ref.dtype)


def mhsa_forward(x, wq_t, wk_t, wv_t, wo_t, gamma, beta, *, n_heads, d_k, d_v, eps=1e-5):
    """x: (B, T, d_model). wq_t/wk_t: (d_model, n_heads*d_k), wv_t: (d_model, n_heads*d_v),
    wo_t: (n_heads*d_v, d_model)  (PyTorch weights pre-transposed so y = x @ W).
    Returns (output (B, T, d_model) f32, attention_weights (B, n_heads, T, T) bf16)."""
    B, T, D = x.shape
    H, DK, DV = n_heads, d_k, d_v
    DKP = _round_up(DK, 128)       # lane-aligned padded head dims
    DVP = _round_up(DV, 128)
    CP = 2 * DKP + DVP             # fused per-head QKV width (all segments 128-aligned)

    # ---- host-side one-time weight re-layout (padded, lane-aligned, scale folded) ----
    wq3 = (wq_t / math.sqrt(DK)).reshape(D, H, DK).transpose(1, 0, 2)   # (H, D, DK)
    wk3 = wk_t.reshape(D, H, DK).transpose(1, 0, 2)                     # (H, D, DK)
    wv3 = wv_t.reshape(D, H, DV).transpose(1, 0, 2)                     # (H, D, DV)

    wqkv_pad = jnp.zeros((H, D, CP), jnp.float32)
    wqkv_pad = wqkv_pad.at[:, :, 0:DK].set(wq3)
    wqkv_pad = wqkv_pad.at[:, :, DKP:DKP + DK].set(wk3)
    wqkv_pad = wqkv_pad.at[:, :, 2 * DKP:2 * DKP + DV].set(wv3)
    wqkv_pad = wqkv_pad.astype(jnp.bfloat16)                            # (H, D, CP)

    wo_pad = jnp.zeros((H, DVP, D), jnp.float32)
    wo_pad = wo_pad.at[:, 0:DV, :].set(wo_t.reshape(H, DV, D))
    wo_pad = wo_pad.astype(jnp.bfloat16)                                # (H, DVP, D)

    gamma2 = gamma.reshape(1, D).astype(jnp.float32)
    beta2 = beta.reshape(1, D).astype(jnp.float32)

    kernel = functools.partial(_mhsa_kernel, DKP=DKP, DVP=DVP, eps=eps)

    out_shape = (
        jax.ShapeDtypeStruct((B, T, D), x.dtype),
        jax.ShapeDtypeStruct((B, H, T, T), jnp.bfloat16),   # bf16 halves attn HBM writeback
    )

    grid_spec = pltpu.PrefetchScalarGridSpec(
        num_scalar_prefetch=0,
        grid=(B, H),
        in_specs=[
            pl.BlockSpec((1, T, D), lambda b, h: (b, 0, 0)),       # x (per batch element)
            pl.BlockSpec((H, D, CP), lambda b, h: (0, 0, 0)),      # fused padded Wqkv, resident
            pl.BlockSpec((H, DVP, D), lambda b, h: (0, 0, 0)),     # padded Wo, resident
            pl.BlockSpec((1, D), lambda b, h: (0, 0)),             # gamma
            pl.BlockSpec((1, D), lambda b, h: (0, 0)),             # beta
        ],
        out_specs=[
            pl.BlockSpec((1, T, D), lambda b, h: (b, 0, 0)),           # output (acc over heads)
            pl.BlockSpec((1, 1, T, T), lambda b, h: (b, h, 0, 0)),     # attention weights, per head
        ],
        scratch_shapes=[
            pltpu.VMEM((T, D), jnp.bfloat16),   # xn (LayerNorm result, reused across heads)
            pltpu.VMEM((T, D), jnp.float32),    # residual + output-projection accumulator
        ],
    )

    return pl.pallas_call(
        kernel,
        out_shape=out_shape,
        grid_spec=grid_spec,
        compiler_params=pltpu.CompilerParams(
            dimension_semantics=("parallel", "arbitrary"),
            vmem_limit_bytes=48 * 1024 * 1024,   # fits v7x's 64 MiB with headroom; fine on v5e/v6e
        ),
    )(x, wqkv_pad, wo_pad, gamma2, beta2)


def _xavier_uniform(key, out_features, in_features):
    # Matches torch.nn.init.xavier_uniform_ on a (out, in) weight.
    bound = math.sqrt(6.0 / (in_features + out_features))
    return jax.random.uniform(key, (out_features, in_features),
                              minval=-bound, maxval=bound, dtype=jnp.float32)


def _reference(x, wq_t, wk_t, wv_t, wo_t, gamma, beta, n_heads, d_k, d_v, eps=1e-5):
    B, T, D = x.shape
    mean = jnp.mean(x, axis=-1, keepdims=True)
    var = jnp.mean((x - mean) ** 2, axis=-1, keepdims=True)
    xn = (x - mean) / jnp.sqrt(var + eps) * gamma + beta
    q = (xn @ wq_t).reshape(B, T, n_heads, d_k).transpose(0, 2, 1, 3)
    k = (xn @ wk_t).reshape(B, T, n_heads, d_k).transpose(0, 2, 1, 3)
    v = (xn @ wv_t).reshape(B, T, n_heads, d_v).transpose(0, 2, 1, 3)
    scores = jnp.einsum("bhtd,bhsd->bhts", q, k) / math.sqrt(d_k)
    attn = jax.nn.softmax(scores, axis=-1)
    ho = jnp.einsum("bhts,bhsd->bhtd", attn, v)
    concat = ho.transpose(0, 2, 1, 3).reshape(B, T, n_heads * d_v)
    out = x + concat @ wo_t
    return out, attn


if __name__ == "__main__":
    # Small shapes consistent with the module's forward.
    B, T, d_model = 2, 8, 32
    n_heads, d_k, d_v = 4, 8, 8

    key = jax.random.PRNGKey(0)
    kx, kq, kk, kv, ko = jax.random.split(key, 5)

    x = jax.random.normal(kx, (B, T, d_model), dtype=jnp.float32)

    # PyTorch-style (out, in) weights with xavier_uniform init, then pre-transpose for the wrapper.
    wq = _xavier_uniform(kq, n_heads * d_k, d_model)
    wk = _xavier_uniform(kk, n_heads * d_k, d_model)
    wv = _xavier_uniform(kv, n_heads * d_v, d_model)
    wo = _xavier_uniform(ko, d_model, n_heads * d_v)
    gamma = jnp.ones((d_model,), dtype=jnp.float32)   # nn.LayerNorm default weight
    beta = jnp.zeros((d_model,), dtype=jnp.float32)   # nn.LayerNorm default bias

    out, attn = mhsa_forward(x, wq.T, wk.T, wv.T, wo.T, gamma, beta,
                             n_heads=n_heads, d_k=d_k, d_v=d_v)
    out = jax.block_until_ready(out)
    attn = jax.block_until_ready(attn)

    # Correctness check against a plain-JAX f32 reference.
    # Tolerance accounts for bf16 MXU operands, bf16 attn output and approximate reciprocal.
    ref_out, ref_attn = _reference(x, wq.T, wk.T, wv.T, wo.T, gamma, beta, n_heads, d_k, d_v)
    attn_f32 = attn.astype(jnp.float32)
    assert out.shape == (B, T, d_model) and attn.shape == (B, n_heads, T, T)
    assert jnp.allclose(out, ref_out, rtol=3e-2, atol=3e-2), \
        f"out mismatch, max diff {jnp.max(jnp.abs(out - ref_out))}"
    assert jnp.allclose(attn_f32, ref_attn, rtol=3e-2, atol=3e-2), \
        f"attn mismatch, max diff {jnp.max(jnp.abs(attn_f32 - ref_attn))}"

    print("KERNEL_OK")
</pallas_src>

<mosaic_0001>
module attributes {stable_mosaic.version = 11 : i64} {
  func.func @_mhsa_kernel(%arg0: i32, %arg1: i32, %arg2: memref<1x8x32xf32, #tpu.memory_space<vmem>>, %arg3: memref<4x32x384xbf16, #tpu.memory_space<vmem>>, %arg4: memref<4x128x32xbf16, #tpu.memory_space<vmem>>, %arg5: memref<1x32xf32, #tpu.memory_space<vmem>>, %arg6: memref<1x32xf32, #tpu.memory_space<vmem>>, %arg7: memref<1x8x32xf32, #tpu.memory_space<vmem>>, %arg8: memref<1x1x8x8xbf16, #tpu.memory_space<vmem>>, %arg9: memref<8x32xbf16, #tpu.memory_space<vmem>>, %arg10: memref<8x32xf32, #tpu.memory_space<vmem>>) attributes {dimension_semantics = [#tpu.dimension_semantics<parallel>, #tpu.dimension_semantics<arbitrary>], iteration_bounds = array<i64: 2, 4>, scalar_prefetch = 0 : i64, scratch_operands = 2 : i64, tpu.core_type = #tpu.core_type<tc>, window_params = [{transform_indices = @transform_0, window_bounds = array<i64: 1, 8, 32>}, {pipeline_mode = #tpu.pipeline_mode<synchronous>, transform_indices = @transform_1, window_bounds = array<i64: 4, 32, 384>}, {pipeline_mode = #tpu.pipeline_mode<synchronous>, transform_indices = @transform_2, window_bounds = array<i64: 4, 128, 32>}, {pipeline_mode = #tpu.pipeline_mode<synchronous>, transform_indices = @transform_3, window_bounds = array<i64: 1, 32>}, {pipeline_mode = #tpu.pipeline_mode<synchronous>, transform_indices = @transform_4, window_bounds = array<i64: 1, 32>}, {transform_indices = @transform_5, window_bounds = array<i64: 1, 8, 32>}, {transform_indices = @transform_6, window_bounds = array<i64: 1, 1, 8, 8>}]} {
    %c0_i32 = arith.constant 0 : i32
    %0 = arith.cmpi eq, %arg1, %c0_i32 : i32
    %1 = arith.extui %0 : i1 to i32
    %c0_i32_0 = arith.constant 0 : i32
    %2 = arith.cmpi ne, %1, %c0_i32_0 : i32
    scf.if %2 {
      %c0_20 = arith.constant 0 : index
      %c0_21 = arith.constant 0 : index
      %c0_22 = arith.constant 0 : index
      %41 = vector.load %arg2[%c0_20, %c0_21, %c0_22] : memref<1x8x32xf32, #tpu.memory_space<vmem>>, vector<1x8x32xf32>
      %42 = vector.shape_cast %41 : vector<1x8x32xf32> to vector<8x32xf32>
      %cst_23 = arith.constant dense<0.000000e+00> : vector<8xf32>
      %43 = vector.multi_reduction <add>, %42, %cst_23 [1] : vector<8x32xf32> to vector<8xf32>
      %44 = vector.shape_cast %43 : vector<8xf32> to vector<8x1xf32>
      %cst_24 = arith.constant 3.200000e+01 : f32
      %45 = vector.broadcast %cst_24 : f32 to vector<8x1xf32>
      %46 = arith.divf %44, %45 : vector<8x1xf32>
      %47 = vector.broadcast %46 : vector<8x1xf32> to vector<8x32xf32>
      %48 = arith.subf %42, %47 : vector<8x32xf32>
      %49 = arith.mulf %48, %48 : vector<8x32xf32>
      %cst_25 = arith.constant dense<0.000000e+00> : vector<8xf32>
      %50 = vector.multi_reduction <add>, %49, %cst_25 [1] : vector<8x32xf32> to vector<8xf32>
      %51 = vector.shape_cast %50 : vector<8xf32> to vector<8x1xf32>
      %cst_26 = arith.constant 3.200000e+01 : f32
      %52 = vector.broadcast %cst_26 : f32 to vector<8x1xf32>
      %53 = arith.divf %51, %52 : vector<8x1xf32>
      %cst_27 = arith.constant 9.99999974E-6 : f32
      %54 = vector.broadcast %cst_27 : f32 to vector<8x1xf32>
      %55 = arith.addf %53, %54 : vector<8x1xf32>
      %56 = math.rsqrt %55 : vector<8x1xf32>
      %57 = vector.broadcast %56 : vector<8x1xf32> to vector<8x32xf32>
      %58 = arith.mulf %48, %57 : vector<8x32xf32>
      %c0_28 = arith.constant 0 : index
      %c0_29 = arith.constant 0 : index
      %59 = vector.load %arg5[%c0_28, %c0_29] : memref<1x32xf32, #tpu.memory_space<vmem>>, vector<1x32xf32>
      %60 = vector.shape_cast %59 : vector<1x32xf32> to vector<32xf32>
      %61 = vector.shape_cast %60 : vector<32xf32> to vector<1x32xf32>
      %62 = vector.broadcast %61 : vector<1x32xf32> to vector<8x32xf32>
      %63 = arith.mulf %58, %62 : vector<8x32xf32>
      %c0_30 = arith.constant 0 : index
      %c0_31 = arith.constant 0 : index
      %64 = vector.load %arg6[%c0_30, %c0_31] : memref<1x32xf32, #tpu.memory_space<vmem>>, vector<1x32xf32>
      %65 = vector.shape_cast %64 : vector<1x32xf32> to vector<32xf32>
      %66 = vector.shape_cast %65 : vector<32xf32> to vector<1x32xf32>
      %67 = vector.broadcast %66 : vector<1x32xf32> to vector<8x32xf32>
      %68 = arith.addf %63, %67 : vector<8x32xf32>
      %69 = arith.truncf %68 : vector<8x32xf32> to vector<8x32xbf16>
      %c0_32 = arith.constant 0 : index
      %c0_33 = arith.constant 0 : index
      %70 = vector.load %arg9[%c0_32, %c0_33] : memref<8x32xbf16, #tpu.memory_space<vmem>>, vector<8x32xbf16>
      tpu.vector_store %arg9[%c0_32, %c0_33], %69 {strides = array<i32>} : memref<8x32xbf16, #tpu.memory_space<vmem>>, vector<8x32xbf16>,
      %c0_34 = arith.constant 0 : index
      %c0_35 = arith.constant 0 : index
      %71 = vector.load %arg10[%c0_34, %c0_35] : memref<8x32xf32, #tpu.memory_space<vmem>>, vector<8x32xf32>
      tpu.vector_store %arg10[%c0_34, %c0_35], %42 {strides = array<i32>} : memref<8x32xf32, #tpu.memory_space<vmem>>, vector<8x32xf32>,
    } else {
    }
    %c0 = arith.constant 0 : index
    %c0_1 = arith.constant 0 : index
    %3 = vector.load %arg9[%c0, %c0_1] : memref<8x32xbf16, #tpu.memory_space<vmem>>, vector<8x32xbf16>
    %4 = arith.index_cast %arg1 : i32 to index
    %c0_2 = arith.constant 0 : index
    %c0_3 = arith.constant 0 : index
    %5 = vector.load %arg3[%4, %c0_2, %c0_3] : memref<4x32x384xbf16, #tpu.memory_space<vmem>>, vector<1x32x384xbf16>
    %6 = vector.shape_cast %5 : vector<1x32x384xbf16> to vector<32x384xbf16>
    %cst = arith.constant dense<0.000000e+00> : vector<8x384xf32>
    %7 = tpu.matmul %3, %6, %cst {dimension_numbers = #tpu.dot_dimension_numbers<[1], [0], [0], [1], [0, 0, 1, 1], [], []>} : vector<8x32xbf16>, vector<32x384xbf16>, vector<8x384xf32> -> vector<8x384xf32>
    %8 = vector.extract_strided_slice %7 {offsets = [0, 0], sizes = [8, 128], strides = [1, 1]} : vector<8x384xf32> to vector<8x128xf32>
    %9 = arith.truncf %8 : vector<8x128xf32> to vector<8x128xbf16>
    %10 = vector.extract_strided_slice %7 {offsets = [0, 128], sizes = [8, 128], strides = [1, 1]} : vector<8x384xf32> to vector<8x128xf32>
    %11 = arith.truncf %10 : vector<8x128xf32> to vector<8x128xbf16>
    %12 = vector.extract_strided_slice %7 {offsets = [0, 256], sizes = [8, 128], strides = [1, 1]} : vector<8x384xf32> to vector<8x128xf32>
    %13 = arith.truncf %12 : vector<8x128xf32> to vector<8x128xbf16>
    %cst_4 = arith.constant dense<0.000000e+00> : vector<8x8xf32>
    %14 = tpu.matmul %9, %11, %cst_4 {dimension_numbers = #tpu.dot_dimension_numbers<[1], [1], [0], [0], [0, 0, 1, 0], [], []>} : vector<8x128xbf16>, vector<8x128xbf16>, vector<8x8xf32> -> vector<8x8xf32>
    %cst_5 = arith.constant dense<0xFF800000> : vector<8xf32>
    %15 = vector.multi_reduction <maximumf>, %14, %cst_5 [1] : vector<8x8xf32> to vector<8xf32>
    %16 = vector.shape_cast %15 : vector<8xf32> to vector<8x1xf32>
    %17 = vector.broadcast %16 : vector<8x1xf32> to vector<8x8xf32>
    %18 = arith.subf %14, %17 : vector<8x8xf32>
    %19 = math.exp %18 : vector<8x8xf32>
    %cst_6 = arith.constant dense<0.000000e+00> : vector<8xf32>
    %20 = vector.multi_reduction <add>, %19, %cst_6 [1] : vector<8x8xf32> to vector<8xf32>
    %21 = vector.shape_cast %20 : vector<8xf32> to vector<8x1xf32>
    %22 = tpu.reciprocal %21 {approx = true} : vector<8x1xf32> -> vector<8x1xf32>
    %23 = vector.broadcast %22 : vector<8x1xf32> to vector<8x8xf32>
    %24 = arith.mulf %19, %23 : vector<8x8xf32>
    %25 = arith.truncf %24 : vector<8x8xf32> to vector<8x8xbf16>
    %c0_7 = arith.constant 0 : index
    %c0_8 = arith.constant 0 : index
    %c0_9 = arith.constant 0 : index
    %c0_10 = arith.constant 0 : index
    %26 = vector.load %arg8[%c0_7, %c0_8, %c0_9, %c0_10] : memref<1x1x8x8xbf16, #tpu.memory_space<vmem>>, vector<1x1x8x8xbf16>
    %27 = vector.shape_cast %26 : vector<1x1x8x8xbf16> to vector<8x8xbf16>
    %28 = vector.shape_cast %25 : vector<8x8xbf16> to vector<1x1x8x8xbf16>
    tpu.vector_store %arg8[%c0_7, %c0_8, %c0_9, %c0_10], %28 {strides = array<i32>} : memref<1x1x8x8xbf16, #tpu.memory_space<vmem>>, vector<1x1x8x8xbf16>,
    %cst_11 = arith.constant dense<0.000000e+00> : vector<8x128xf32>
    %29 = tpu.matmul %25, %13, %cst_11 {dimension_numbers = #tpu.dot_dimension_numbers<[1], [0], [0], [1], [0, 0, 1, 1], [], []>} : vector<8x8xbf16>, vector<8x128xbf16>, vector<8x128xf32> -> vector<8x128xf32>
    %c0_12 = arith.constant 0 : index
    %c0_13 = arith.constant 0 : index
    %30 = vector.load %arg10[%c0_12, %c0_13] : memref<8x32xf32, #tpu.memory_space<vmem>>, vector<8x32xf32>
    %31 = arith.truncf %29 : vector<8x128xf32> to vector<8x128xbf16>
    %32 = arith.index_cast %arg1 : i32 to index
    %c0_14 = arith.constant 0 : index
    %c0_15 = arith.constant 0 : index
    %33 = vector.load %arg4[%32, %c0_14, %c0_15] : memref<4x128x32xbf16, #tpu.memory_space<vmem>>, vector<1x128x32xbf16>
    %34 = vector.shape_cast %33 : vector<1x128x32xbf16> to vector<128x32xbf16>
    %cst_16 = arith.constant dense<0.000000e+00> : vector<8x32xf32>
    %35 = tpu.matmul %31, %34, %cst_16 {dimension_numbers = #tpu.dot_dimension_numbers<[1], [0], [0], [1], [0, 0, 1, 1], [], []>} : vector<8x128xbf16>, vector<128x32xbf16>, vector<8x32xf32> -> vector<8x32xf32>
    %36 = arith.addf %30, %35 : vector<8x32xf32>
    %c0_17 = arith.constant 0 : index
    %c0_18 = arith.constant 0 : index
    %37 = vector.load %arg10[%c0_17, %c0_18] : memref<8x32xf32, #tpu.memory_space<vmem>>, vector<8x32xf32>
    tpu.vector_store %arg10[%c0_17, %c0_18], %36 {strides = array<i32>} : memref<8x32xf32, #tpu.memory_space<vmem>>, vector<8x32xf32>,
    %c3_i32 = arith.constant 3 : i32
    %38 = arith.cmpi eq, %arg1, %c3_i32 : i32
    %39 = arith.extui %38 : i1 to i32
    %c0_i32_19 = arith.constant 0 : i32
    %40 = arith.cmpi ne, %39, %c0_i32_19 : i32
    scf.if %40 {
      %c0_20 = arith.constant 0 : index
      %c0_21 = arith.constant 0 : index
      %41 = vector.load %arg10[%c0_20, %c0_21] : memref<8x32xf32, #tpu.memory_space<vmem>>, vector<8x32xf32>
      %c0_22 = arith.constant 0 : index
      %c0_23 = arith.constant 0 : index
      %c0_24 = arith.constant 0 : index
      %42 = vector.load %arg7[%c0_22, %c0_23, %c0_24] : memref<1x8x32xf32, #tpu.memory_space<vmem>>, vector<1x8x32xf32>
      %43 = vector.shape_cast %42 : vector<1x8x32xf32> to vector<8x32xf32>
      %44 = vector.shape_cast %41 : vector<8x32xf32> to vector<1x8x32xf32>
      tpu.vector_store %arg7[%c0_22, %c0_23, %c0_24], %44 {strides = array<i32>} : memref<1x8x32xf32, #tpu.memory_space<vmem>>, vector<1x8x32xf32>,
    } else {
    }
    return
  }
  func.func @transform_0(%arg0: i32, %arg1: i32) -> (i32, i32, i32) {
    %c0_i32 = arith.constant 0 : i32
    %c0_i32_0 = arith.constant 0 : i32
    %c0_i32_1 = arith.constant 0 : i32
    return %arg0, %c0_i32, %c0_i32_0 : i32, i32, i32
  }
  func.func @transform_1(%arg0: i32, %arg1: i32) -> (i32, i32, i32) {
    %c0_i32 = arith.constant 0 : i32
    %c0_i32_0 = arith.constant 0 : i32
    %c0_i32_1 = arith.constant 0 : i32
    %c0_i32_2 = arith.constant 0 : i32
    return %c0_i32, %c0_i32_0, %c0_i32_1 : i32, i32, i32
  }
  func.func @transform_2(%arg0: i32, %arg1: i32) -> (i32, i32, i32) {
    %c0_i32 = arith.constant 0 : i32
    %c0_i32_0 = arith.constant 0 : i32
    %c0_i32_1 = arith.constant 0 : i32
    %c0_i32_2 = arith.constant 0 : i32
    return %c0_i32, %c0_i32_0, %c0_i32_1 : i32, i32, i32
  }
  func.func @transform_3(%arg0: i32, %arg1: i32) -> (i32, i32) {
    %c0_i32 = arith.constant 0 : i32
    %c0_i32_0 = arith.constant 0 : i32
    %c0_i32_1 = arith.constant 0 : i32
    return %c0_i32, %c0_i32_0 : i32, i32
  }
  func.func @transform_4(%arg0: i32, %arg1: i32) -> (i32, i32) {
    %c0_i32 = arith.constant 0 : i32
    %c0_i32_0 = arith.constant 0 : i32
    %c0_i32_1 = arith.constant 0 : i32
    return %c0_i32, %c0_i32_0 : i32, i32
  }
  func.func @transform_5(%arg0: i32, %arg1: i32) -> (i32, i32, i32) {
    %c0_i32 = arith.constant 0 : i32
    %c0_i32_0 = arith.constant 0 : i32
    %c0_i32_1 = arith.constant 0 : i32
    return %arg0, %c0_i32, %c0_i32_0 : i32, i32, i32
  }
  func.func @transform_6(%arg0: i32, %arg1: i32) -> (i32, i32, i32, i32) {
    %c0_i32 = arith.constant 0 : i32
    %c0_i32_0 = arith.constant 0 : i32
    %c0_i32_1 = arith.constant 0 : i32
    return %arg0, %arg1, %c0_i32, %c0_i32_0 : i32, i32, i32, i32
  }
}

</mosaic_0001>

<llo_original>
// kernel: tpu_custom_call.1
$region0: #{tpu_custom_call.1}
  #allocation0 [shape = 'u32[]', space=smem, size = 0x4, offset = 0x4, fixed_abs, tag = 'smem constant byte address 0x4 - core index']
  #allocation1 [shape = 'u32[144,128]{1,0:T(1,128)}', space=vmem, size = 0x12000, scoped, tag = 'internal scratch']
  #allocation2 [shape = 'bf16[8,32]{1,0:T(8,128)(2,1)}', space=vmem, size = 0x800, scoped, tag = 'scratch operand']
  #allocation3 [shape = 'f32[8,32]{1,0:T(8,128)}', space=vmem, size = 0x1000, scoped, tag = 'scratch operand']
  %s0 = inlined_call_operand.vmem [shape: f32[2,8,32], index: 0, kind: input, shape index: {}]
  %s1 = inlined_call_operand.vmem [shape: bf16[4,32,384], index: 1, kind: input, shape index: {}]
  %s2 = inlined_call_operand.vmem [shape: bf16[4,128,32], index: 2, kind: input, shape index: {}]
  %s3 = inlined_call_operand.vmem [shape: f32[1,32], index: 3, kind: input, shape index: {}]
  %s4 = inlined_call_operand.vmem [shape: f32[1,32], index: 4, kind: input, shape index: {}]
  %s5 = inlined_call_operand.hbm [shape: f32[2,8,32], index: 5, kind: output, shape index: {0}]
  %s6 = inlined_call_operand.hbm [shape: bf16[2,4,8,8], index: 6, kind: output, shape index: {1}]
  %7 = xla_tuple %s5, %s6
  %s8 = sld [smem:[#allocation0]]
  $region69: #{tpu_custom_call.1} parent=0
    _
  %s10 = ssub.s32 1, %s8
  %s11 = scalar_select 0, %s10, %s8
  $region1: #{tpu_custom_call.1} parent=0
    #allocation4 [shape = 'u8[8192]{0}', space=vmem, size = 0x2000, scoped, tag = 'output window, operand 0']
    #allocation5 [shape = 's32[2]{0}', space=sflag, size = 0x8, scoped, tag = 'scoped memory for tpu_custom_call.1']
    #allocation6 [shape = 'u8[4096]{0}', space=vmem, size = 0x1000, scoped, tag = 'output window, operand 1']
    #allocation7 [shape = 's32[2]{0}', space=sflag, size = 0x8, scoped, tag = 'scoped memory for tpu_custom_call.1']
    %12 = vsyncpa [#allocation5], 0
    %s13 = scalar_lea.sflag [#allocation5], 1
    %14 = vsyncpa %s13, 0
    %15 = vsyncpa [#allocation7], 0
    %s16 = scalar_lea.sflag [#allocation7], 1
    %17 = vsyncpa %s16, 0
    loop: start=0, step=1, limit=10
    $region2: #{tpu_custom_call.1} parent=1 // loop_pre_header
      _
    $region3: #{tpu_custom_call.1} parent=1 // loop_header
      %s19 = sphi 0, %s23
      %p20 = scmp.ge.s32.totalorder %s19, 10
      %s26 = sphi 0, %s38
      %s27 = sphi 0, %s34
      %s28 = sphi 0, %s26
      %s29 = sphi 0, %s27
      %s30 = sphi 0, %s28
      %s31 = sphi 0, %s29
      %s41 = sphi 0, %s43
      %s44 = sphi 0, %s41
      %s45 = sphi 0, %s44
      %s61 = sphi 0, %s45
      %s65 = sphi 0, %s65
      %s67 = sphi 0, %s65
      %s68 = sphi 0, %s67
      %s82 = sphi 0, %s68
      %s86 = sphi 0, %s86
      %s88 = sphi 0, %s86
      %s89 = sphi 0, %s88
      %s103 = sphi 0, %s89
      %s107 = sphi 0, %s107
      %s109 = sphi 0, %s107
      %s110 = sphi 0, %s109
      %s124 = sphi 0, %s110
      %s128 = sphi 0, %s128
      %s130 = sphi 0, %s128
      %s131 = sphi 0, %s130
      %s145 = sphi 0, %s131
      %s151 = sphi 0, %s153
      %s154 = sphi 0, %s151
      %s155 = sphi 0, %s154
      %s171 = sphi 0, %s155
      %s179 = sphi 0, %s181
      %s182 = sphi 0, %s179
      %s183 = sphi 0, %s182
      %s199 = sphi 0, %s183
    $region4: #{tpu_custom_call.1} parent=1 // loop_header_branch
      %22 = sbr.rel (%p20) target = $region8
    $region5: #{tpu_custom_call.1} parent=1 // loop_body
      %s24 = ssub.s32 %s19, 1
      %s25 = ssub.s32 %s19, 2
      %s32 = sadd.s32 1, %s27
      %p33 = scmp.ge.s32.totalorder %s32, 4
      %s34 = scalar_select %p33, 0, %s32
      %s35 = sadd.s32 1, %s26
      %s36 = scalar_select %p33, %s35, %s26
      %p37 = scmp.ge.s32.totalorder %s36, 2
      %s38 = scalar_select %p37, 0, %s36
      %s39 = ssub.s32 %s26, %s38
      %p40 = scmp.eq.s32.totalorder %s39, 0
      %s42 = sadd.s32 %s41, 1
      %s43 = scalar_select %p40, %s41, %s42
      %p46 = pneg %p40
      %p47 = scmp.eq.s32.totalorder %s19, 7
      %p48 = por %p46, %p47
      %p49 = scmp.ne.s32.totalorder %s41, %s44
      %p50 = scmp.eq.s32.totalorder %s19, 0
      %p51 = por %p49, %p50
      %p52 = scmp.ne.s32.totalorder %s41, %s44
      %p53 = scmp.eq.s32.totalorder %s24, 7
      %p54 = por %p52, %p53
      %p55 = scmp.ne.s32.totalorder %s44, %s45
      %p56 = scmp.eq.s32.totalorder %s24, 0
      %p57 = por %p55, %p56
      %p58 = scmp.ne.s32.totalorder %s44, %s45
      %p59 = scmp.eq.s32.totalorder %s25, 7
      %p60 = por %p58, %p59
      %p62 = scmp.ne.s32.totalorder %s45, %s61
      %p63 = scmp.eq.s32.totalorder %s25, 0
      %p64 = por %p62, %p63
      %s66 = sadd.s32 %s65, 1
      %p69 = scmp.eq.s32.totalorder %s19, 7
      %p70 = scmp.ne.s32.totalorder %s65, %s67
      %p71 = scmp.eq.s32.totalorder %s19, 0
      %p72 = por %p70, %p71
      %p73 = scmp.ne.s32.totalorder %s65, %s67
      %p74 = scmp.eq.s32.totalorder %s24, 7
      %p75 = por %p73, %p74
      %p76 = scmp.ne.s32.totalorder %s67, %s68
      %p77 = scmp.eq.s32.totalorder %s24, 0
      %p78 = por %p76, %p77
      %p79 = scmp.ne.s32.totalorder %s67, %s68
      %p80 = scmp.eq.s32.totalorder %s25, 7
      %p81 = por %p79, %p80
      %p83 = scmp.ne.s32.totalorder %s68, %s82
      %p84 = scmp.eq.s32.totalorder %s25, 0
      %p85 = por %p83, %p84
      %s87 = sadd.s32 %s86, 1
      %p90 = scmp.eq.s32.totalorder %s19, 7
      %p91 = scmp.ne.s32.totalorder %s86, %s88
      %p92 = scmp.eq.s32.totalorder %s19, 0
      %p93 = por %p91, %p92
      %p94 = scmp.ne.s32.totalorder %s86, %s88
      %p95 = scmp.eq.s32.totalorder %s24, 7
      %p96 = por %p94, %p95
      %p97 = scmp.ne.s32.totalorder %s88, %s89
      %p98 = scmp.eq.s32.totalorder %s24, 0
      %p99 = por %p97, %p98
      %p100 = scmp.ne.s32.totalorder %s88, %s89
      %p101 = scmp.eq.s32.totalorder %s25, 7
      %p102 = por %p100, %p101
      %p104 = scmp.ne.s32.totalorder %s89, %s103
      %p105 = scmp.eq.s32.totalorder %s25, 0
      %p106 = por %p104, %p105
      %s108 = sadd.s32 %s107, 1
      %p111 = scmp.eq.s32.totalorder %s19, 7
      %p112 = scmp.ne.s32.totalorder %s107, %s109
      %p113 = scmp.eq.s32.totalorder %s19, 0
      %p114 = por %p112, %p113
      %p115 = scmp.ne.s32.totalorder %s107, %s109
      %p116 = scmp.eq.s32.totalorder %s24, 7
      %p117 = por %p115, %p116
      %p118 = scmp.ne.s32.totalorder %s109, %s110
      %p119 = scmp.eq.s32.totalorder %s24, 0
      %p120 = por %p118, %p119
      %p121 = scmp.ne.s32.totalorder %s109, %s110
      %p122 = scmp.eq.s32.totalorder %s25, 7
      %p123 = por %p121, %p122
      %p125 = scmp.ne.s32.totalorder %s110, %s124
      %p126 = scmp.eq.s32.totalorder %s25, 0
      %p127 = por %p125, %p126
      %s129 = sadd.s32 %s128, 1
      %p132 = scmp.eq.s32.totalorder %s19, 7
      %p133 = scmp.ne.s32.totalorder %s128, %s130
      %p134 = scmp.eq.s32.totalorder %s19, 0
      %p135 = por %p133, %p134
      %p136 = scmp.ne.s32.totalorder %s128, %s130
      %p137 = scmp.eq.s32.totalorder %s24, 7
      %p138 = por %p136, %p137
      %p139 = scmp.ne.s32.totalorder %s130, %s131
      %p140 = scmp.eq.s32.totalorder %s24, 0
      %p141 = por %p139, %p140
      %p142 = scmp.ne.s32.totalorder %s130, %s131
      %p143 = scmp.eq.s32.totalorder %s25, 7
      %p144 = por %p142, %p143
      %p146 = scmp.ne.s32.totalorder %s131, %s145
      %p147 = scmp.eq.s32.totalorder %s25, 0
      %p148 = por %p146, %p147
      %s149 = ssub.s32 %s26, %s38
      %p150 = scmp.eq.s32.totalorder %s149, 0
      %s152 = sadd.s32 %s151, 1
      %s153 = scalar_select %p150, %s151, %s152
      %p156 = pneg %p150
      %p157 = scmp.eq.s32.totalorder %s19, 7
      %p158 = por %p156, %p157
      %p159 = scmp.ne.s32.totalorder %s151, %s154
      %p160 = scmp.eq.s32.totalorder %s19, 0
      %p161 = por %p159, %p160
      %p162 = scmp.ne.s32.totalorder %s151, %s154
      %p163 = scmp.eq.s32.totalorder %s24, 7
      %p164 = por %p162, %p163
      %p165 = scmp.ne.s32.totalorder %s154, %s155
      %p166 = scmp.eq.s32.totalorder %s24, 0
      %p167 = por %p165, %p166
      %p168 = scmp.ne.s32.totalorder %s154, %s155
      %p169 = scmp.eq.s32.totalorder %s25, 7
      %p170 = por %p168, %p169
      %p172 = scmp.ne.s32.totalorder %s155, %s171
      %p173 = scmp.eq.s32.totalorder %s25, 0
      %p174 = por %p172, %p173
      %s175 = ssub.s32 %s26, %s38
      %s176 = ssub.s32 %s27, %s34
      %s177 = sor.u32 %s175, %s176
      %p178 = scmp.eq.s32.totalorder %s177, 0
      %s180 = sadd.s32 %s179, 1
      %s181 = scalar_select %p178, %s179, %s180
      %p184 = pneg %p178
      %p185 = scmp.eq.s32.totalorder %s19, 7
      %p186 = por %p184, %p185
      %p187 = scmp.ne.s32.totalorder %s179, %s182
      %p188 = scmp.eq.s32.totalorder %s19, 0
      %p189 = por %p187, %p188
      %p190 = scmp.ne.s32.totalorder %s179, %s182
      %p191 = scmp.eq.s32.totalorder %s24, 7
      %p192 = por %p190, %p191
      %p193 = scmp.ne.s32.totalorder %s182, %s183
      %p194 = scmp.eq.s32.totalorder %s24, 0
      %p195 = por %p193, %p194
      %p196 = scmp.ne.s32.totalorder %s182, %s183
      %p197 = scmp.eq.s32.totalorder %s25, 7
      %p198 = por %p196, %p197
      %p200 = scmp.ne.s32.totalorder %s183, %s199
      %p201 = scmp.eq.s32.totalorder %s25, 0
      %p202 = por %p200, %p201
      %p203 = scmp.le.s32.totalorder 1, %s19
      %p204 = scmp.lt.s32.totalorder %s19, 9
      %p205 = pnand %p203, %p204
      %p206 = pneg %p205
      // Predicated region
      $region9: #{tpu_custom_call.1} parent=5 // pred_check
        _
      $region10: #{tpu_custom_call.1} parent=5 // pred_check_branch
        %208 = sbr.rel (%p205) target = $region12
      $region11: #{tpu_custom_call.1} parent=5 // pred_region
        %s209 = ssub.s32 %s19, 1
        // Predicated region
        $region13: #{tpu_custom_call.1} parent=11 // pred_check
          %p210 = pneg %p78
        $region14: #{tpu_custom_call.1} parent=11 // pred_check_branch
          %212 = sbr.rel (%p210) target = $region16
        $region15: #{tpu_custom_call.1} parent=11 // pred_region
          _
        $region16: #{tpu_custom_call.1} parent=11 // pred_fallthru
          _
        // Predicated region
        $region17: #{tpu_custom_call.1} parent=11 // pred_check
          %p213 = pneg %p99
        $region18: #{tpu_custom_call.1} parent=11 // pred_check_branch
          %215 = sbr.rel (%p213) target = $region20
        $region19: #{tpu_custom_call.1} parent=11 // pred_region
          _
        $region20: #{tpu_custom_call.1} parent=11 // pred_fallthru
          _
        // Predicated region
        $region21: #{tpu_custom_call.1} parent=11 // pred_check
          %p216 = pneg %p120
        $region22: #{tpu_custom_call.1} parent=11 // pred_check_branch
          %218 = sbr.rel (%p216) target = $region24
        $region23: #{tpu_custom_call.1} parent=11 // pred_region
          _
        $region24: #{tpu_custom_call.1} parent=11 // pred_fallthru
          _
        // Predicated region
        $region25: #{tpu_custom_call.1} parent=11 // pred_check
          %p219 = pneg %p141
        $region26: #{tpu_custom_call.1} parent=11 // pred_check_branch
          %221 = sbr.rel (%p219) target = $region28
        $region27: #{tpu_custom_call.1} parent=11 // pred_region
          _
        $region28: #{tpu_custom_call.1} parent=11 // pred_fallthru
          _
      $region12: #{tpu_custom_call.1} parent=5 // pred_fallthru
        _
      %p222 = scmp.lt.s32.totalorder %s19, 8
      // Predicated region
      $region29: #{tpu_custom_call.1} parent=5 // pred_check
        %p223 = pneg %p222
      $region30: #{tpu_custom_call.1} parent=5 // pred_check_branch
        %225 = sbr.rel (%p223) target = $region32
      $region31: #{tpu_custom_call.1} parent=5 // pred_region
        // Predicated region
        $region33: #{tpu_custom_call.1} parent=31 // pred_check
          %p226 = pneg %p51
        $region34: #{tpu_custom_call.1} parent=31 // pred_check_branch
          %228 = sbr.rel (%p226) target = $region36
        $region35: #{tpu_custom_call.1} parent=31 // pred_region
          %p229 = scmp.lt.s32.totalorder %s26, 1
          %s230 = scalar_select %p229, %s26, 1
          %s231 = smul.addr %s230, 8
          %s232 = scalar_lea.vmem %s0, %s231
        $region36: #{tpu_custom_call.1} parent=31 // pred_fallthru
          _
      $region32: #{tpu_custom_call.1} parent=5 // pred_fallthru
        _
      %p233 = scmp.le.s32.totalorder 1, %s19
      %p234 = scmp.lt.s32.totalorder %s19, 9
      %p235 = pnand %p233, %p234
      %p236 = pneg %p235
      // Predicated region
      $region37: #{tpu_custom_call.1} parent=5 // pred_check
        _
      $region38: #{tpu_custom_call.1} parent=5 // pred_check_branch
        %238 = sbr.rel (%p235) target = $region40
      $region39: #{tpu_custom_call.1} parent=5 // pred_region
        %s239 = ssub.s32 %s19, 1
        %p240 = scmp.lt.s32.totalorder %s28, 1
        %s241 = scalar_select %p240, %s28, 1
        %s242 = smul.addr %s241, 8
        %s243 = scalar_lea.vmem %s0, %s242
        %p244 = pneg %p57
        %p245 = pneg %p54
        %p246 = pneg %p78
        %p247 = pneg %p75
        %p248 = pneg %p99
        %p249 = pneg %p96
        %p250 = pneg %p120
        %p251 = pneg %p117
        %p252 = pneg %p141
        %p253 = pneg %p138
        %p254 = pneg %p167
        %p255 = pneg %p164
        %s256 = sand.u32 %s154, 1
        %s257 = scalar_lea.sflag [#allocation5], %s256
        %s258 = sand.u32 %s154, 1
        %s259 = smul.addr %s258, 8
        %s260 = scalar_lea.vmem [#allocation4], %s259
        %p261 = pneg %p195
        %p262 = pneg %p192
        %s263 = sand.u32 %s182, 1
        %s264 = scalar_lea.sflag [#allocation7], %s263
        %s265 = sand.u32 %s182, 1
        %s266 = smul.addr %s265, 4
        %s267 = scalar_lea.vmem [#allocation6], %s266
        %p268 = scmp.lt.s32.totalorder %s28, 1
        %s269 = scalar_select %p268, %s28, 1
        %s270 = smul.addr %s269, 8
        %s271 = scalar_lea.vmem %s0, %s270
        %p273 = scmp.eq.s32.totalorder %s29, 0
        // Predicated region
        $region41: #{tpu_custom_call.1} parent=39 // pred_check
          %p274 = pneg %p273
        $region42: #{tpu_custom_call.1} parent=39 // pred_check_branch
          %276 = sbr.rel (%p274) target = $region44
        $region43: #{tpu_custom_call.1} parent=39 // pred_region
          %v277 = vld [vmem:[%s271] sm:$0xff]
          %vm278 = vcmask 261120
          %v279 = vsel %vm278, %v277, 0.0
          %280 = vadd.xlane.f32.xlu0 %v279
          %v281 = vpop.xlane.xlu0 %280
          %v282 = vrcp.pop 32.0
          %v283 = vmul.f32 %v281, %v282
          %v284 = vsub.f32 %v277, %v283
          %v285 = vmul.f32 %v284, %v284
          %v286 = vsel %vm278, %v285, 0.0
          %287 = vadd.xlane.f32.xlu0 %v286
          %v288 = vpop.xlane.xlu0 %287
          %v289 = vmul.f32 %v288, %v282
          %v290 = vadd.f32 %v289, 1e-05
          %v291 = vrsqrt.pop %v290
          %v292 = vmul.f32 %v284, %v291
          %v293 = vld [vmem:[%s3] sm:$0x1]
          %v295 = vlaneseq
          %v296 = vshrl.u32 %v295, 7
          %v297 = vsub.s32 0, %v296
          %v298 = vrot.slane %v293, %v297
          %v300 = vmul.f32 %v292, %v298
          %v301 = vld [vmem:[%s4] sm:$0x1]
          %v303 = vlaneseq
          %v304 = vshrl.u32 %v303, 7
          %v305 = vsub.s32 0, %v304
          %v306 = vrot.slane %v301, %v305
          %v308 = vadd.f32 %v300, %v306
          %v309 = vpack.c.bf16 %v308, %v308
          %vm310 = vcmask 257024
          %311 = vst.msk [vmem:[#allocation2] sm:$0xf] %vm310, %v309
          %312 = vst.msk [vmem:[#allocation3] sm:$0xff] %vm278, %v277
        $region44: #{tpu_custom_call.1} parent=39 // pred_fallthru
          _
        %v313 = vld [vmem:[#allocation2] sm:$0xf]
        %s314 = smul.u32 %s29, 12
        %s315 = smul.addr %s314, 4
        %s316 = scalar_lea.vmem %s1, %s315
        %v317 = vld [vmem:[%s316] sm:$0xff]
        %v318 = vld [vmem:[%s316 + $0x8] sm:$0xf]
        %v319 = vld [vmem:[%s316 + $0xc] sm:$0xff]
        %v320 = vld [vmem:[%s316 + $0x14] sm:$0xf]
        %v321 = vld [vmem:[%s316 + $0x18] sm:$0xff]
        %v322 = vld [vmem:[%s316 + $0x20] sm:$0xf]
        %v323 = vld [vmem:[%s316 + $0x24] sm:$0xff]
        %v324 = vld [vmem:[%s316 + $0x2c] sm:$0xf]
        %v333 = vunpack.c.l.b16 %v317
        %v334 = vunpack.c.h.b16 %v317
        %v335 = vunpack.c.l.b16 %v318
        %v336 = vunpack.c.l.b16 %v319
        %v337 = vunpack.c.h.b16 %v319
        %v338 = vunpack.c.l.b16 %v320
        %v339 = vunpack.c.l.b16 %v321
        %v340 = vunpack.c.h.b16 %v321
        %v341 = vunpack.c.l.b16 %v322
        %v342 = vunpack.c.l.b16 %v323
        %v343 = vunpack.c.h.b16 %v323
        %v344 = vunpack.c.l.b16 %v324
        %v345 = vpack.c.b16 %v336, %v333
        %v346 = vpack.c.b16 %v337, %v334
        %v347 = vpack.c.b16 %v338, %v335
        %v348 = vpack.c.b16 %v342, %v339
        %v349 = vpack.c.b16 %v343, %v340
        %v350 = vpack.c.b16 %v344, %v341
        %vm357 = vcmask 261120
        %v359 = vsel %vm357, %v313, 0
        %361 = vmatprep.subr.bf16.mxu0 %v346
        %362 = vmatpush1.bf16.msra.mxu0 %v345
        %363 = vmatprep.subr.bf16.mxu0 %v349
        %364 = vmatpush1.bf16.msra.mxu0 %v348
        %365 = vmatprep.subr.bf16.mxu0 0
        %366 = vmatpush1.bf16.msra.mxu0 0
        %367 = vmatprep.subr.bf16.mxu0 0
        %368 = vmatpush1.bf16.msra.mxu0 0
        %369 = vmatprep.subr.bf16.mxu0 0
        %370 = vmatpush1.bf16.msra.mxu0 0
        %371 = vmatprep.subr.bf16.mxu0 0
        %372 = vmatpush1.bf16.msra.mxu0 0
        %373 = vmatprep.subr.bf16.mxu0 0
        %374 = vmatpush1.bf16.msra.mxu0 0
        %375 = vmatprep.subr.bf16.mxu0 0
        %376 = vmatpush1.bf16.msra.mxu0 0
        %377 = vmatprep.subr.bf16.mxu0 0
        %378 = vmatpush1.bf16.msra.mxu0 0
        %379 = vmatprep.subr.bf16.mxu0 0
        %380 = vmatpush1.bf16.msra.mxu0 0
        %381 = vmatprep.subr.bf16.mxu0 0
        %382 = vmatpush1.bf16.msra.mxu0 0
        %383 = vmatprep.subr.bf16.mxu0 0
        %384 = vmatpush1.bf16.msra.mxu0 0
        %385 = vmatprep.subr.bf16.mxu0 0
        %386 = vmatpush1.bf16.msra.mxu0 0
        %387 = vmatprep.subr.bf16.mxu0 0
        %388 = vmatpush1.bf16.msra.mxu0 0
        %389 = vmatprep.subr.bf16.mxu0 0
        %390 = vmatpush1.bf16.msra.mxu0 0
        %391 = vmatprep.subr.bf16.mxu0 0
        %392 = vmatpush1.bf16.msra.mxu0 0
        %393 = vmatprep.mubr.bf16.mxu0 0
        %394 = vmatmul.mubr.bf16.gmra.mrb[0].mxu0 %v359
        %v395 = vpop.f32.mrb[0].mxu0
        %v396 = vadd.f32 0.0, %v395
        %v397 = vpop.f32.mrb[0].mxu0
        %v398 = vadd.f32 0.0, %v397
        %v399 = vpop.f32.mrb[0].mxu0
        %v400 = vpop.f32.mrb[0].mxu0
        %401 = vdwg.mxu0
        %402 = vmatprep.subr.bf16.mxu0 0
        %403 = vmatpush1.bf16.msra.mxu0 %v347
        %404 = vmatprep.subr.bf16.mxu0 0
        %405 = vmatpush1.bf16.msra.mxu0 %v350
        %406 = vmatprep.subr.bf16.mxu0 0
        %407 = vmatpush1.bf16.msra.mxu0 0
        %408 = vmatprep.subr.bf16.mxu0 0
        %409 = vmatpush1.bf16.msra.mxu0 0
        %410 = vmatprep.subr.bf16.mxu0 0
        %411 = vmatpush1.bf16.msra.mxu0 0
        %412 = vmatprep.subr.bf16.mxu0 0
        %413 = vmatpush1.bf16.msra.mxu0 0
        %414 = vmatprep.subr.bf16.mxu0 0
        %415 = vmatpush1.bf16.msra.mxu0 0
        %416 = vmatprep.subr.bf16.mxu0 0
        %417 = vmatpush1.bf16.msra.mxu0 0
        %418 = vmatprep.subr.bf16.mxu0 0
        %419 = vmatpush1.bf16.msra.mxu0 0
        %420 = vmatprep.subr.bf16.mxu0 0
        %421 = vmatpush1.bf16.msra.mxu0 0
        %422 = vmatprep.subr.bf16.mxu0 0
        %423 = vmatpush1.bf16.msra.mxu0 0
        %424 = vmatprep.subr.bf16.mxu0 0
        %425 = vmatpush1.bf16.msra.mxu0 0
        %426 = vmatprep.subr.bf16.mxu0 0
        %427 = vmatpush1.bf16.msra.mxu0 0
        %428 = vmatprep.subr.bf16.mxu0 0
        %429 = vmatpush1.bf16.msra.mxu0 0
        %430 = vmatprep.subr.bf16.mxu0 0
        %431 = vmatpush1.bf16.msra.mxu0 0
        %432 = vmatprep.subr.bf16.mxu0 0
        %433 = vmatpush1.bf16.msra.mxu0 0
        %434 = vmatprep.mubr.bf16.mxu0 0
        %435 = vmatmul.mubr.bf16.gmra.mrb[0].mxu0 %v359
        %v436 = vpop.f32.mrb[0].mxu0
        %v437 = vadd.f32 0.0, %v436
        %v438 = vpop.f32.mrb[0].mxu0
        %v439 = vpop.f32.mrb[0].mxu0
        %v440 = vpop.f32.mrb[0].mxu0
        %441 = vdwg.mxu0
        %v442 = vpack.c.bf16 %v396, %v396
        %v443 = vpack.c.bf16 %v398, %v398
        %v444 = vpack.c.bf16 %v437, %v437
        %445 = vmatprep.subr.bf16.mxu0 0
        %446 = vmatpush1.bf16.xpose.msra.mxu0 %v443
        %447 = vmatprep.subr.bf16.mxu0 0
        %448 = vmatpush1.bf16.xpose.msra.mxu0 0
        %449 = vmatprep.subr.bf16.mxu0 0
        %450 = vmatpush1.bf16.xpose.msra.mxu0 0
        %451 = vmatprep.subr.bf16.mxu0 0
        %452 = vmatpush1.bf16.xpose.msra.mxu0 0
        %453 = vmatprep.subr.bf16.mxu0 0
        %454 = vmatpush1.bf16.xpose.msra.mxu0 0
        %455 = vmatprep.subr.bf16.mxu0 0
        %456 = vmatpush1.bf16.xpose.msra.mxu0 0
        %457 = vmatprep.subr.bf16.mxu0 0
        %458 = vmatpush1.bf16.xpose.msra.mxu0 0
        %459 = vmatprep.subr.bf16.mxu0 0
        %460 = vmatpush1.bf16.xpose.msra.mxu0 0
        %461 = vmatprep.subr.bf16.mxu0 0
        %462 = vmatpush1.bf16.xpose.msra.mxu0 0
        %463 = vmatprep.subr.bf16.mxu0 0
        %464 = vmatpush1.bf16.xpose.msra.mxu0 0
        %465 = vmatprep.subr.bf16.mxu0 0
        %466 = vmatpush1.bf16.xpose.msra.mxu0 0
        %467 = vmatprep.subr.bf16.mxu0 0
        %468 = vmatpush1.bf16.xpose.msra.mxu0 0
        %469 = vmatprep.subr.bf16.mxu0 0
        %470 = vmatpush1.bf16.xpose.msra.mxu0 0
        %471 = vmatprep.subr.bf16.mxu0 0
        %472 = vmatpush1.bf16.xpose.msra.mxu0 0
        %473 = vmatprep.subr.bf16.mxu0 0
        %474 = vmatpush1.bf16.xpose.msra.mxu0 0
        %475 = vmatprep.subr.bf16.mxu0 0
        %476 = vmatpush1.bf16.xpose.msra.mxu0 0
        %477 = vmatprep.mubr.bf16.mxu0 0
        %478 = vmatmul.mubr.bf16.gmra.mrb[0].mxu0 %v442
        %v479 = vpop.f32.mrb[0].mxu0
        %v480 = vadd.f32 0.0, %v479
        %v481 = vpop.f32.mrb[0].mxu0
        %v482 = vpop.f32.mrb[0].mxu0
        %v483 = vpop.f32.mrb[0].mxu0
        %484 = vdwg.mxu0
        %vm485 = vcmask 64512
        %v486 = vsel %vm485, %v480, -inf
        %487 = vmax.xlane.f32.xlu0 %v486
        %v488 = vpop.xlane.xlu0 %487
        %v489 = vsub.f32 %v480, %v488
        %v490 = vmul.f32 %v489, 1.442695
        %v491 = vpow.pop %v490
        %v492 = vsel %vm485, %v491, 0.0
        %493 = vadd.xlane.f32.xlu0 %v492
        %v494 = vpop.xlane.xlu0 %493
        %v495 = vrcp.pop %v494
        %v496 = vmul.f32 %v491, %v495
        %v497 = vpack.c.bf16 %v496, %v496
        %vm498 = vcmask 60416
        %499 = vst.msk [vmem:[%s267] sm:$0xf] %vm498, %v497
        %v501 = vsel %vm485, %v497, 0
        %vm503 = vcmask 1043456
        %v505 = vsel %vm503, %v444, 0
        %507 = vmatprep.subr.bf16.mxu0 0
        %508 = vmatpush1.bf16.msra.mxu0 %v505
        %509 = vmatprep.subr.bf16.mxu0 0
        %510 = vmatpush1.bf16.msra.mxu0 0
        %511 = vmatprep.subr.bf16.mxu0 0
        %512 = vmatpush1.bf16.msra.mxu0 0
        %513 = vmatprep.subr.bf16.mxu0 0
        %514 = vmatpush1.bf16.msra.mxu0 0
        %515 = vmatprep.subr.bf16.mxu0 0
        %516 = vmatpush1.bf16.msra.mxu0 0
        %517 = vmatprep.subr.bf16.mxu0 0
        %518 = vmatpush1.bf16.msra.mxu0 0
        %519 = vmatprep.subr.bf16.mxu0 0
        %520 = vmatpush1.bf16.msra.mxu0 0
        %521 = vmatprep.subr.bf16.mxu0 0
        %522 = vmatpush1.bf16.msra.mxu0 0
        %523 = vmatprep.subr.bf16.mxu0 0
        %524 = vmatpush1.bf16.msra.mxu0 0
        %525 = vmatprep.subr.bf16.mxu0 0
        %526 = vmatpush1.bf16.msra.mxu0 0
        %527 = vmatprep.subr.bf16.mxu0 0
        %528 = vmatpush1.bf16.msra.mxu0 0
        %529 = vmatprep.subr.bf16.mxu0 0
        %530 = vmatpush1.bf16.msra.mxu0 0
        %531 = vmatprep.subr.bf16.mxu0 0
        %532 = vmatpush1.bf16.msra.mxu0 0
        %533 = vmatprep.subr.bf16.mxu0 0
        %534 = vmatpush1.bf16.msra.mxu0 0
        %535 = vmatprep.subr.bf16.mxu0 0
        %536 = vmatpush1.bf16.msra.mxu0 0
        %537 = vmatprep.subr.bf16.mxu0 0
        %538 = vmatpush1.bf16.msra.mxu0 0
        %539 = vmatprep.mubr.bf16.mxu0 0
        %540 = vmatmul.mubr.bf16.gmra.mrb[0].mxu0 %v501
        %v541 = vpop.f32.mrb[0].mxu0
        %v542 = vadd.f32 0.0, %v541
        %v543 = vpop.f32.mrb[0].mxu0
        %v544 = vpop.f32.mrb[0].mxu0
        %v545 = vpop.f32.mrb[0].mxu0
        %546 = vdwg.mxu0
        %v547 = vld [vmem:[#allocation3] sm:$0xff]
        %v548 = vpack.c.bf16 %v542, %v542
        %s549 = smul.u32 %s29, 16
        %s550 = smul.addr %s549, 4
        %s551 = scalar_lea.vmem %s2, %s550
        %v552 = vld [vmem:[%s551] sm:$0xf]
        %v553 = vld [vmem:[%s551 + $0x4] sm:$0xf]
        %v554 = vld [vmem:[%s551 + $0x8] sm:$0xf]
        %v555 = vld [vmem:[%s551 + $0xc] sm:$0xf]
        %v556 = vld [vmem:[%s551 + $0x10] sm:$0xf]
        %v557 = vld [vmem:[%s551 + $0x14] sm:$0xf]
        %v558 = vld [vmem:[%s551 + $0x18] sm:$0xf]
        %v559 = vld [vmem:[%s551 + $0x1c] sm:$0xf]
        %v560 = vld [vmem:[%s551 + $0x20] sm:$0xf]
        %v561 = vld [vmem:[%s551 + $0x24] sm:$0xf]
        %v562 = vld [vmem:[%s551 + $0x28] sm:$0xf]
        %v563 = vld [vmem:[%s551 + $0x2c] sm:$0xf]
        %v564 = vld [vmem:[%s551 + $0x30] sm:$0xf]
        %v565 = vld [vmem:[%s551 + $0x34] sm:$0xf]
        %v566 = vld [vmem:[%s551 + $0x38] sm:$0xf]
        %v567 = vld [vmem:[%s551 + $0x3c] sm:$0xf]
        %v584 = vunpack.c.l.b16 %v552
        %v585 = vunpack.c.l.b16 %v553
        %v586 = vunpack.c.l.b16 %v554
        %v587 = vunpack.c.l.b16 %v555
        %v588 = vunpack.c.l.b16 %v556
        %v589 = vunpack.c.l.b16 %v557
        %v590 = vunpack.c.l.b16 %v558
        %v591 = vunpack.c.l.b16 %v559
        %v592 = vunpack.c.l.b16 %v560
        %v593 = vunpack.c.l.b16 %v561
        %v594 = vunpack.c.l.b16 %v562
        %v595 = vunpack.c.l.b16 %v563
        %v596 = vunpack.c.l.b16 %v564
        %v597 = vunpack.c.l.b16 %v565
        %v598 = vunpack.c.l.b16 %v566
        %v599 = vunpack.c.l.b16 %v567
        %v600 = vpack.c.b16 %v585, %v584
        %v601 = vpack.c.b16 %v587, %v586
        %v602 = vpack.c.b16 %v589, %v588
        %v603 = vpack.c.b16 %v591, %v590
        %v604 = vpack.c.b16 %v593, %v592
        %v605 = vpack.c.b16 %v595, %v594
        %v606 = vpack.c.b16 %v597, %v596
        %v607 = vpack.c.b16 %v599, %v598
        %616 = vmatprep.subr.bf16.mxu0 0
        %617 = vmatpush1.bf16.msra.mxu0 %v600
        %618 = vmatprep.subr.bf16.mxu0 0
        %619 = vmatpush1.bf16.msra.mxu0 %v601
        %620 = vmatprep.subr.bf16.mxu0 0
        %621 = vmatpush1.bf16.msra.mxu0 %v602
        %622 = vmatprep.subr.bf16.mxu0 0
        %623 = vmatpush1.bf16.msra.mxu0 %v603
        %624 = vmatprep.subr.bf16.mxu0 0
        %625 = vmatpush1.bf16.msra.mxu0 %v604
        %626 = vmatprep.subr.bf16.mxu0 0
        %627 = vmatpush1.bf16.msra.mxu0 %v605
        %628 = vmatprep.subr.bf16.mxu0 0
        %629 = vmatpush1.bf16.msra.mxu0 %v606
        %630 = vmatprep.subr.bf16.mxu0 0
        %631 = vmatpush1.bf16.msra.mxu0 %v607
        %632 = vmatprep.subr.bf16.mxu0 0
        %633 = vmatpush1.bf16.msra.mxu0 0
        %634 = vmatprep.subr.bf16.mxu0 0
        %635 = vmatpush1.bf16.msra.mxu0 0
        %636 = vmatprep.subr.bf16.mxu0 0
        %637 = vmatpush1.bf16.msra.mxu0 0
        %638 = vmatprep.subr.bf16.mxu0 0
        %639 = vmatpush1.bf16.msra.mxu0 0
        %640 = vmatprep.subr.bf16.mxu0 0
        %641 = vmatpush1.bf16.msra.mxu0 0
        %642 = vmatprep.subr.bf16.mxu0 0
        %643 = vmatpush1.bf16.msra.mxu0 0
        %644 = vmatprep.subr.bf16.mxu0 0
        %645 = vmatpush1.bf16.msra.mxu0 0
        %646 = vmatprep.subr.bf16.mxu0 0
        %647 = vmatpush1.bf16.msra.mxu0 0
        %648 = vmatprep.mubr.bf16.mxu0 0
        %649 = vmatmul.mubr.bf16.gmra.mrb[0].mxu0 %v548
        %v650 = vpop.f32.mrb[0].mxu0
        %v651 = vadd.f32 0.0, %v650
        %v652 = vpop.f32.mrb[0].mxu0
        %v653 = vpop.f32.mrb[0].mxu0
        %v654 = vpop.f32.mrb[0].mxu0
        %655 = vdwg.mxu0
        %v656 = vadd.f32 %v547, %v651
        %657 = vst.msk [vmem:[#allocation3] sm:$0xff] %vm357, %v656
        %p658 = scmp.eq.s32.totalorder %s29, 3
        // Predicated region
        $region45: #{tpu_custom_call.1} parent=39 // pred_check
          %p659 = pneg %p658
        $region46: #{tpu_custom_call.1} parent=39 // pred_check_branch
          %661 = sbr.rel (%p659) target = $region48
        $region47: #{tpu_custom_call.1} parent=39 // pred_region
          %v662 = vld [vmem:[#allocation3] sm:$0xff]
          %663 = vst.msk [vmem:[%s260] sm:$0xff] %vm357, %v662
        $region48: #{tpu_custom_call.1} parent=39 // pred_fallthru
          _
        %s664 = sand.u32 %s154, 1
        %s665 = scalar_lea.sflag [#allocation5], %s664
        %s666 = sand.u32 %s154, 1
        %s667 = smul.addr %s666, 8
        %s668 = scalar_lea.vmem [#allocation4], %s667
        %s669 = sand.u32 %s182, 1
        %s670 = scalar_lea.sflag [#allocation7], %s669
        %s671 = sand.u32 %s182, 1
        %s672 = smul.addr %s671, 4
        %s673 = scalar_lea.vmem [#allocation6], %s672
        // Predicated region
        $region49: #{tpu_custom_call.1} parent=39 // pred_check
          %p674 = pneg %p164
        $region50: #{tpu_custom_call.1} parent=39 // pred_check_branch
          %676 = sbr.rel (%p674) target = $region52
        $region51: #{tpu_custom_call.1} parent=39 // pred_region
          %s678 = ssub.s32 128, 128
          %679 = vsyncadd %s665, %s678
          %s680 = smul.addr %s28, 128
          %s681 = scalar_lea.hbm %s5, %s680
          %s683 = sshll.u32 %s668, 4
          %s684 = int_to_ptr.vmem [resolvable:$true] %s683
          %686 = dma.vmem_to_hbm [thread:$0]  %s684, 128, %s681, %s665
        $region52: #{tpu_custom_call.1} parent=39 // pred_fallthru
          _
        // Predicated region
        $region53: #{tpu_custom_call.1} parent=39 // pred_check
          %p687 = pneg %p192
        $region54: #{tpu_custom_call.1} parent=39 // pred_check_branch
          %689 = sbr.rel (%p687) target = $region56
        $region55: #{tpu_custom_call.1} parent=39 // pred_region
          %s691 = ssub.s32 64, 64
          %692 = vsyncadd %s670, %s691
          %s693 = smul.addr %s28, 4
          %s694 = sadd.s32 %s29, %s693
          %s695 = smul.addr %s694, 64
          %s696 = scalar_lea.hbm %s6, %s695
          %s698 = sshll.u32 %s673, 4
          %s699 = int_to_ptr.vmem [resolvable:$true] %s698
          %701 = dma.vmem_to_hbm [thread:$0]  %s699, 64, %s696, %s670
        $region56: #{tpu_custom_call.1} parent=39 // pred_fallthru
          _
      $region40: #{tpu_custom_call.1} parent=5 // pred_fallthru
        _
      %p702 = scmp.le.s32.totalorder 2, %s19
      // Predicated region
      $region57: #{tpu_custom_call.1} parent=5 // pred_check
        %p703 = pneg %p702
      $region58: #{tpu_custom_call.1} parent=5 // pred_check_branch
        %705 = sbr.rel (%p703) target = $region60
      $region59: #{tpu_custom_call.1} parent=5 // pred_region
        %s706 = ssub.s32 %s19, 2
        // Predicated region
        $region61: #{tpu_custom_call.1} parent=59 // pred_check
          %p707 = pneg %p170
        $region62: #{tpu_custom_call.1} parent=59 // pred_check_branch
          %709 = sbr.rel (%p707) target = $region64
        $region63: #{tpu_custom_call.1} parent=59 // pred_region
          %s710 = sand.u32 %s155, 1
          %s711 = scalar_lea.sflag [#allocation5], %s710
          %s712 = sand.u32 %s155, 1
          %s713 = smul.addr %s712, 8
          %s714 = scalar_lea.vmem [#allocation4], %s713
          %715 = dma.done %s711, 128
        $region64: #{tpu_custom_call.1} parent=59 // pred_fallthru
          _
        // Predicated region
        $region65: #{tpu_custom_call.1} parent=59 // pred_check
          %p716 = pneg %p198
        $region66: #{tpu_custom_call.1} parent=59 // pred_check_branch
          %718 = sbr.rel (%p716) target = $region68
        $region67: #{tpu_custom_call.1} parent=59 // pred_region
          %s719 = sand.u32 %s183, 1
          %s720 = scalar_lea.sflag [#allocation7], %s719
          %s721 = sand.u32 %s183, 1
          %s722 = smul.addr %s721, 4
          %s723 = scalar_lea.vmem [#allocation6], %s722
          %724 = dma.done %s720, 64
        $region68: #{tpu_custom_call.1} parent=59 // pred_fallthru
          _
      $region60: #{tpu_custom_call.1} parent=5 // pred_fallthru
        _
    $region6: #{tpu_custom_call.1} parent=1 // loop_footer
      %s23 = sadd.s32 1, %s19
    $region7: #{tpu_custom_call.1} parent=1 // loop_footer_branch
      %18 = sbr.rel target = $region3
    $region8: #{tpu_custom_call.1} parent=1 // loop_exit
      _
    %725 = vsyncpa [#allocation5], 1
    %s726 = scalar_lea.sflag [#allocation5], 1
    %727 = vsyncpa %s726, 1
    %728 = vsyncpa [#allocation7], 1
    %s729 = scalar_lea.sflag [#allocation7], 1
    %730 = vsyncpa %s729, 1

</llo_original>
